<compile_context>
chip_gen: v6e
topology: v6e:2x2x1
jax: 0.10.0
libtpu: 0.0.40
codegen_flags: <defaults>
</compile_context>

<pallas_src>
import functools

import jax
import jax.numpy as jnp
from jax.experimental import pallas as pl
from jax.experimental.pallas import tpu as pltpu


def _round_up(x: int, m: int) -> int:
    return ((x + m - 1) // m) * m


_SINGLE_K_THRESHOLD = 2048              # up to this reduction depth: one MXU K pass
_K_TILE_CANDIDATES = (2048, 1024, 512, 256)


def _select_k_tiling(k: int):
    """Return (tk, k_pad). Prefer a single K step; else a tk that divides K exactly."""
    if k <= _SINGLE_K_THRESHOLD:
        return k, k
    for tk in _K_TILE_CANDIDATES:
        if k % tk == 0:
            return tk, k
    tk = 1024
    return tk, _round_up(k, tk)


def _select_tm(b: int) -> int:
    """Pick the batch tile minimizing padding waste (prefer larger tiles on ties)."""
    if b <= 256:
        return _round_up(b, 8)
    best_tm, best_pad = None, None
    for cand in (512, 256, 128):
        pad = (-b) % cand
        if best_pad is None or pad < best_pad:
            best_tm, best_pad = cand, pad
    return best_tm


# ----------------------------------------------------------------------------
# Kernels
# ----------------------------------------------------------------------------
def _fused_linear_kernel_single_k(x_ref, w_ref, b_ref, o_ref):
    # Whole reduction in one pass: no accumulator scratch, no epilogue branch,
    # exactly one store per output tile.
    o_ref[...] = (
        jnp.dot(x_ref[...], w_ref[...], preferred_element_type=jnp.float32)
        + b_ref[...].astype(jnp.float32)
    ).astype(o_ref.dtype)


def _fused_linear_kernel_multi_k(x_ref, w_ref, b_ref, o_ref, acc_ref):
    k = pl.program_id(2)

    @pl.when(k == 0)
    def _():
        # Fold the bias into the accumulator init: epilogue is then just cast+store.
        acc_ref[...] = jnp.broadcast_to(
            b_ref[...].astype(jnp.float32), acc_ref.shape
        )

    acc_ref[...] += jnp.dot(
        x_ref[...], w_ref[...], preferred_element_type=jnp.float32
    )

    @pl.when(k == pl.num_programs(2) - 1)
    def _():
        o_ref[...] = acc_ref[...].astype(o_ref.dtype)


# ----------------------------------------------------------------------------
# One-time parameter preparation (keep OUT of the hot path).
# ----------------------------------------------------------------------------
def prepare_vae_linear_params(w_mu, b_mu, w_lv, b_lv):
    """Fuse + transpose + pad the two nn.Linear heads (done once, offline).

    w_mu, w_lv : [out_features, in_features]   (PyTorch convention)
    b_mu, b_lv : [out_features]
    Returns (w_fused [K_pad, N_pad], b_fused [1, N_pad]) where
      out_f_pad = round_up(out_features, 128)
      N_pad     = 2 * out_f_pad                       (multiple of 256)
      K_pad     = in_features padded to the chosen K tiling (usually == in_features).
    mu occupies columns [0, out_f_pad), log_var occupies [out_f_pad, 2*out_f_pad).
    """
    out_f, in_f = w_mu.shape
    out_f_pad = _round_up(out_f, 128)
    pad_cols = out_f_pad - out_f

    w_mu_t = jnp.pad(w_mu.T, ((0, 0), (0, pad_cols))) if pad_cols else w_mu.T
    w_lv_t = jnp.pad(w_lv.T, ((0, 0), (0, pad_cols))) if pad_cols else w_lv.T
    b_mu_p = jnp.pad(b_mu, (0, pad_cols)) if pad_cols else b_mu
    b_lv_p = jnp.pad(b_lv, (0, pad_cols)) if pad_cols else b_lv

    w = jnp.concatenate([w_mu_t, w_lv_t], axis=1)                     # [in_f, N_pad]
    b = jnp.concatenate([b_mu_p, b_lv_p], axis=0).reshape(1, -1)      # [1, N_pad]

    # K padding (if any) is paid once here, not per call.
    _, k_pad = _select_k_tiling(in_f)
    if k_pad != in_f:
        w = jnp.pad(w, ((0, k_pad - in_f), (0, 0)))
    return w, b


# ----------------------------------------------------------------------------
# Hot-path call: tiled, pipelined fused linear.
# ----------------------------------------------------------------------------
@functools.partial(jax.jit, static_argnames=("out_features",))
def vae_linear_fused(x, w_fused, b_fused, *, out_features):
    """
    x        : [B, in_features]
    w_fused  : [K_pad, N_pad]   (from prepare_vae_linear_params)
    b_fused  : [1, N_pad]
    returns (mu, log_var), each [B, out_features]
    """
    B, K = x.shape
    K_pad_w, N_pad = w_fused.shape
    out_f_pad = _round_up(out_features, 128)
    assert N_pad == 2 * out_f_pad, "fused weight N does not match out_features padding"

    # ---- tile selection (static; shapes are concrete under jit) ----
    tk, K_pad = _select_k_tiling(K)
    assert K_pad == K_pad_w, "x / fused-weight inner-dimension mismatch"

    tm = _select_tm(B)
    B_pad = _round_up(B, tm)
    tn = 512 if N_pad % 512 == 0 else 256

    # Guarantee >= 2 parallel blocks when possible (v7x: 2 TensorCores per chip).
    if (B_pad // tm) * (N_pad // tn) == 1:
        if N_pad >= 512:
            tn = N_pad // 2                # still a multiple of 256
        elif B_pad >= 16 and B_pad % 16 == 0:
            tm = B_pad // 2

    # ---- pad x only when unavoidable (zeros don't change the result) ----
    x_p = x
    if B_pad != B or K_pad != K:
        x_p = jnp.pad(x, ((0, B_pad - B), (0, K_pad - K)))

    grid_m = B_pad // tm
    grid_n = N_pad // tn
    grid_k = K_pad // tk
    itemsize = jnp.dtype(x.dtype).itemsize

    # Grid-aware HBM traffic estimate (advisory).
    cost = pl.CostEstimate(
        flops=2 * B_pad * K_pad * N_pad,
        transcendentals=0,
        bytes_accessed=(
            B_pad * K_pad * itemsize * grid_n        # x re-streamed per N block
            + K_pad * N_pad * itemsize * grid_m      # weight re-streamed per M block
            + N_pad * itemsize * grid_m              # bias
            + B_pad * N_pad * itemsize               # output
        ),
    )

    # VMEM budget from the actual working set (double-buffered I/O + f32 acc),
    # capped at 48 MiB so it also fits v7x's 64 MiB per-core VMEM.
    working_set = 2 * (tm * tk + tk * tn + tn) * itemsize + 2 * tm * tn * itemsize
    if grid_k > 1:
        working_set += tm * tn * 4
    vmem_limit = int(min(max(working_set * 3 // 2, 32 * 1024 * 1024),
                         48 * 1024 * 1024))

    if grid_k == 1:
        # Specialized single-K-pass kernel: 2-D grid, no scratch, no pl.when.
        out = pl.pallas_call(
            _fused_linear_kernel_single_k,
            out_shape=jax.ShapeDtypeStruct((B_pad, N_pad), x.dtype),
            grid_spec=pltpu.PrefetchScalarGridSpec(
                num_scalar_prefetch=0,
                grid=(grid_m, grid_n),
                in_specs=[
                    pl.BlockSpec((tm, K_pad), lambda i, j: (i, 0)),   # x tile
                    pl.BlockSpec((K_pad, tn), lambda i, j: (0, j)),   # weight tile
                    pl.BlockSpec((1, tn), lambda i, j: (0, j)),       # bias tile
                ],
                out_specs=pl.BlockSpec((tm, tn), lambda i, j: (i, j)),
            ),
            compiler_params=pltpu.CompilerParams(
                dimension_semantics=("parallel", "parallel"),
                vmem_limit_bytes=vmem_limit,
            ),
            cost_estimate=cost,
        )(x_p, w_fused, b_fused)
    else:
        out = pl.pallas_call(
            _fused_linear_kernel_multi_k,
            out_shape=jax.ShapeDtypeStruct((B_pad, N_pad), x.dtype),
            grid_spec=pltpu.PrefetchScalarGridSpec(
                num_scalar_prefetch=0,
                grid=(grid_m, grid_n, grid_k),
                in_specs=[
                    pl.BlockSpec((tm, tk), lambda i, j, k: (i, k)),   # x tile
                    pl.BlockSpec((tk, tn), lambda i, j, k: (k, j)),   # weight tile
                    pl.BlockSpec((1, tn), lambda i, j, k: (0, j)),    # bias tile
                ],
                out_specs=pl.BlockSpec((tm, tn), lambda i, j, k: (i, j)),
                scratch_shapes=[pltpu.VMEM((tm, tn), jnp.float32)],
            ),
            compiler_params=pltpu.CompilerParams(
                dimension_semantics=("parallel", "parallel", "arbitrary"),
                vmem_limit_bytes=vmem_limit,
            ),
            cost_estimate=cost,
        )(x_p, w_fused, b_fused)

    # Lane-aligned slices: mu at column 0, log_var at column out_f_pad.
    mu = out[:B, :out_features]
    log_var = out[:B, out_f_pad:out_f_pad + out_features]
    return mu, log_var


def vae_linear(x, w_mu, b_mu, w_lv, b_lv):
    """Convenience wrapper matching the original (mu, log_var) = module(batch) signature.

    NOTE: for repeated (hot-path) use, call prepare_vae_linear_params() once and reuse
    its outputs with vae_linear_fused() — the transpose/concat/pad must not be paid per
    forward pass.
    """
    out_f = int(w_mu.shape[0])
    w_fused, b_fused = prepare_vae_linear_params(w_mu, b_mu, w_lv, b_lv)
    return vae_linear_fused(x, w_fused, b_fused, out_features=out_f)


def _init_linear_params(key, in_features, out_features, dtype=jnp.float32):
    """Deterministic init mimicking nn.Linear's U(-1/sqrt(in), 1/sqrt(in))."""
    kw, kb = jax.random.split(key)
    bound = 1.0 / (in_features ** 0.5)
    w = jax.random.uniform(kw, (out_features, in_features), dtype, -bound, bound)
    b = jax.random.uniform(kb, (out_features,), dtype, -bound, bound)
    return w, b


if __name__ == "__main__":
    key = jax.random.PRNGKey(0)

    # ---- Test 1: small shapes (single-K-pass kernel path) ----
    k_x, k_mu, k_lv, key = jax.random.split(key, 4)
    B, in_features, out_features = 8, 32, 16
    x = jax.random.normal(k_x, (B, in_features), dtype=jnp.float32)
    w_mu, b_mu = _init_linear_params(k_mu, in_features, out_features)
    w_lv, b_lv = _init_linear_params(k_lv, in_features, out_features)

    w_fused, b_fused = prepare_vae_linear_params(w_mu, b_mu, w_lv, b_lv)
    mu, log_var = vae_linear_fused(x, w_fused, b_fused, out_features=out_features)
    jax.block_until_ready((mu, log_var))

    mu_ref = x @ w_mu.T + b_mu
    lv_ref = x @ w_lv.T + b_lv
    assert mu.shape == (B, out_features) and log_var.shape == (B, out_features)
    assert jnp.allclose(mu, mu_ref, rtol=1e-5, atol=1e-4), "mu mismatch (test 1)"
    assert jnp.allclose(log_var, lv_ref, rtol=1e-5, atol=1e-4), "log_var mismatch (test 1)"

    # Convenience wrapper (original signature).
    mu2, lv2 = vae_linear(x, w_mu, b_mu, w_lv, b_lv)
    jax.block_until_ready((mu2, lv2))
    assert jnp.allclose(mu2, mu_ref, rtol=1e-5, atol=1e-4)
    assert jnp.allclose(lv2, lv_ref, rtol=1e-5, atol=1e-4)

    # ---- Test 2: deeper reduction + odd head width (multi-K accumulator path) ----
    k_x2, k_mu2, k_lv2, key = jax.random.split(key, 4)
    B2, in2, out2 = 8, 2560, 200
    x2 = jax.random.normal(k_x2, (B2, in2), dtype=jnp.float32)
    w_mu2, b_mu2 = _init_linear_params(k_mu2, in2, out2)
    w_lv2, b_lv2 = _init_linear_params(k_lv2, in2, out2)

    wf2, bf2 = prepare_vae_linear_params(w_mu2, b_mu2, w_lv2, b_lv2)
    mu3, lv3 = vae_linear_fused(x2, wf2, bf2, out_features=out2)
    jax.block_until_ready((mu3, lv3))

    mu3_ref = x2 @ w_mu2.T + b_mu2
    lv3_ref = x2 @ w_lv2.T + b_lv2
    assert mu3.shape == (B2, out2) and lv3.shape == (B2, out2)
    assert jnp.allclose(mu3, mu3_ref, rtol=1e-5, atol=1e-4), "mu mismatch (test 2)"
    assert jnp.allclose(lv3, lv3_ref, rtol=1e-5, atol=1e-4), "log_var mismatch (test 2)"

    print("KERNEL_OK")
</pallas_src>

<mosaic_0001>
module attributes {stable_mosaic.version = 11 : i64} {
  func.func @_fused_linear_kernel_single_k(%arg0: i32, %arg1: i32, %arg2: memref<8x32xf32, #tpu.memory_space<vmem>>, %arg3: memref<32x256xf32, #tpu.memory_space<vmem>>, %arg4: memref<1x256xf32, #tpu.memory_space<vmem>>, %arg5: memref<8x256xf32, #tpu.memory_space<vmem>>) attributes {dimension_semantics = [#tpu.dimension_semantics<parallel>, #tpu.dimension_semantics<parallel>], iteration_bounds = array<i64: 1, 1>, scalar_prefetch = 0 : i64, scratch_operands = 0 : i64, tpu.core_type = #tpu.core_type<tc>, window_params = [{transform_indices = @transform_0, window_bounds = array<i64: 8, 32>}, {transform_indices = @transform_1, window_bounds = array<i64: 32, 256>}, {transform_indices = @transform_2, window_bounds = array<i64: 1, 256>}, {transform_indices = @transform_3, window_bounds = array<i64: 8, 256>}]} {
    %c0 = arith.constant 0 : index
    %c0_0 = arith.constant 0 : index
    %0 = vector.load %arg2[%c0, %c0_0] : memref<8x32xf32, #tpu.memory_space<vmem>>, vector<8x32xf32>
    %c0_1 = arith.constant 0 : index
    %c0_2 = arith.constant 0 : index
    %1 = vector.load %arg3[%c0_1, %c0_2] : memref<32x256xf32, #tpu.memory_space<vmem>>, vector<32x256xf32>
    %cst = arith.constant dense<0.000000e+00> : vector<8x256xf32>
    %2 = tpu.matmul %0, %1, %cst {dimension_numbers = #tpu.dot_dimension_numbers<[1], [0], [0], [1], [0, 0, 1, 1], [], []>} : vector<8x32xf32>, vector<32x256xf32>, vector<8x256xf32> -> vector<8x256xf32>
    %c0_3 = arith.constant 0 : index
    %c0_4 = arith.constant 0 : index
    %3 = vector.load %arg4[%c0_3, %c0_4] : memref<1x256xf32, #tpu.memory_space<vmem>>, vector<1x256xf32>
    %4 = vector.broadcast %3 : vector<1x256xf32> to vector<8x256xf32>
    %5 = arith.addf %2, %4 : vector<8x256xf32>
    %c0_5 = arith.constant 0 : index
    %c0_6 = arith.constant 0 : index
    %6 = vector.load %arg5[%c0_5, %c0_6] : memref<8x256xf32, #tpu.memory_space<vmem>>, vector<8x256xf32>
    tpu.vector_store %arg5[%c0_5, %c0_6], %5 {strides = array<i32>} : memref<8x256xf32, #tpu.memory_space<vmem>>, vector<8x256xf32>,
    return
  }
  func.func @transform_0(%arg0: i32, %arg1: i32) -> (i32, i32) {
    %c0_i32 = arith.constant 0 : i32
    %c0_i32_0 = arith.constant 0 : i32
    return %arg0, %c0_i32 : i32, i32
  }
  func.func @transform_1(%arg0: i32, %arg1: i32) -> (i32, i32) {
    %c0_i32 = arith.constant 0 : i32
    %c0_i32_0 = arith.constant 0 : i32
    return %c0_i32, %arg1 : i32, i32
  }
  func.func @transform_2(%arg0: i32, %arg1: i32) -> (i32, i32) {
    %c0_i32 = arith.constant 0 : i32
    %c0_i32_0 = arith.constant 0 : i32
    return %c0_i32, %arg1 : i32, i32
  }
  func.func @transform_3(%arg0: i32, %arg1: i32) -> (i32, i32) {
    %c0_i32 = arith.constant 0 : i32
    return %arg0, %arg1 : i32, i32
  }
}

</mosaic_0001>

<llo_original>
// kernel: vae_linear_fused.1
$region0: #{vae_linear_fused.1}
  #allocation0 [shape = 'u32[]', space=smem, size = 0x4, offset = 0x4, fixed_abs, tag = 'smem constant byte address 0x4 - core index']
  #allocation1 [shape = 'u32[144,128]{1,0:T(1,128)}', space=vmem, size = 0x12000, scoped, tag = 'internal scratch']
  %s0 = inlined_call_operand.hbm [shape: f32[8,32], index: 0, kind: input, shape index: {}]
  %s1 = inlined_call_operand.hbm [shape: f32[32,256], index: 1, kind: input, shape index: {}]
  %s2 = inlined_call_operand.vmem [shape: f32[1,256], index: 2, kind: input, shape index: {}]
  %s3 = inlined_call_operand.vmem [shape: f32[8,256], index: 3, kind: output, shape index: {}]
  %s4 = sld [smem:[#allocation0]]
  $region30: #{vae_linear_fused.1} parent=0
    _
  %s6 = ssub.s32 1, %s4
  %s7 = scalar_select 0, %s6, %s4
  $region1: #{vae_linear_fused.1} parent=0
    #allocation2 [shape = 'u8[4096]{0}', space=vmem, size = 0x1000, scoped, tag = 'input window, operand 0, single buffered']
    #allocation3 [shape = 's32[1]{0}', space=sflag, size = 0x4, scoped, tag = 'scoped memory for vae_linear_fused.1']
    #allocation4 [shape = 'u8[32768]{0}', space=vmem, size = 0x8000, scoped, tag = 'input window, operand 1, single buffered']
    #allocation5 [shape = 's32[1]{0}', space=sflag, size = 0x4, scoped, tag = 'scoped memory for vae_linear_fused.1']
    %8 = vsyncpa [#allocation3], 0
    %9 = vsyncpa [#allocation5], 0
    // Predicated region
    $region2: #{vae_linear_fused.1} parent=1 // pred_check
      _
    $region3: #{vae_linear_fused.1} parent=1 // pred_check_branch
      %11 = sbr.rel (0) target = $region5
    $region4: #{vae_linear_fused.1} parent=1 // pred_region
      %s13 = ssub.s32 128, 128
      %14 = vsyncadd [#allocation3], %s13
      %s16 = sshll.u32 [#allocation2], 4
      %s17 = int_to_ptr.vmem [resolvable:$true] %s16
      %19 = dma.hbm_to_vmem [thread:$0]  %s0, 128, %s17, [#allocation3]
    $region5: #{vae_linear_fused.1} parent=1 // pred_fallthru
      _
    // Predicated region
    $region6: #{vae_linear_fused.1} parent=1 // pred_check
      _
    $region7: #{vae_linear_fused.1} parent=1 // pred_check_branch
      %21 = sbr.rel (0) target = $region9
    $region8: #{vae_linear_fused.1} parent=1 // pred_region
      %s23 = ssub.s32 1024, 1024
      %24 = vsyncadd [#allocation5], %s23
      %s25 = sshll.u32 [#allocation4], 4
      %s26 = int_to_ptr.vmem [resolvable:$true] %s25
      %31 = dma.hbm_to_vmem [thread:$0]  %s1, 1024, %s26, [#allocation5], 256, 256, 16
    $region9: #{vae_linear_fused.1} parent=1 // pred_fallthru
      _
    // Predicated region
    $region10: #{vae_linear_fused.1} parent=1 // pred_check
      _
    $region11: #{vae_linear_fused.1} parent=1 // pred_check_branch
      %33 = sbr.rel (0) target = $region13
    $region12: #{vae_linear_fused.1} parent=1 // pred_region
      _
    $region13: #{vae_linear_fused.1} parent=1 // pred_fallthru
      _
    // Predicated region
    $region14: #{vae_linear_fused.1} parent=1 // pred_check
      _
    $region15: #{vae_linear_fused.1} parent=1 // pred_check_branch
      %35 = sbr.rel (0) target = $region17
    $region16: #{vae_linear_fused.1} parent=1 // pred_region
      %36 = dma.done [#allocation3], 128
    $region17: #{vae_linear_fused.1} parent=1 // pred_fallthru
      _
    // Predicated region
    $region18: #{vae_linear_fused.1} parent=1 // pred_check
      _
    $region19: #{vae_linear_fused.1} parent=1 // pred_check_branch
      %38 = sbr.rel (0) target = $region21
    $region20: #{vae_linear_fused.1} parent=1 // pred_region
      %39 = dma.done [#allocation5], 1024
    $region21: #{vae_linear_fused.1} parent=1 // pred_fallthru
      _
    %v40 = vld [vmem:[#allocation2] sm:$0xff]
    %v41 = vld [vmem:[#allocation4] sm:$0xff]
    %v42 = vld [vmem:[#allocation4 + $0x8] sm:$0xff]
    %v43 = vld [vmem:[#allocation4 + $0x10] sm:$0xff]
    %v44 = vld [vmem:[#allocation4 + $0x18] sm:$0xff]
    %v45 = vld [vmem:[#allocation4 + $0x20] sm:$0xff]
    %v46 = vld [vmem:[#allocation4 + $0x28] sm:$0xff]
    %v47 = vld [vmem:[#allocation4 + $0x30] sm:$0xff]
    %v48 = vld [vmem:[#allocation4 + $0x38] sm:$0xff]
    %v49 = vld [vmem:[%s2] sm:$0x3]
    %v51 = vlaneseq
    %v52 = vshrl.u32 %v51, 7
    %v53 = vsub.s32 0, %v52
    %v54 = vrot.slane %v49, %v53
    %v55 = vlaneseq
    %v56 = vshrl.u32 %v55, 7
    %v57 = vsub.s32 1, %v56
    %v58 = vrot.slane %v49, %v57
    %vm61 = vcmask 261120
    %v63 = vsel %vm61, %v40, 0
    %65 = vmatprep.subr.mxu0 0.0
    %66 = vmatpush1.msra.mxu0 0.0
    %67 = vmatprep.subr.mxu0 0.0
    %68 = vmatpush1.msra.mxu0 0.0
    %69 = vmatprep.subr.mxu0 0.0
    %70 = vmatpush1.msra.mxu0 0.0
    %71 = vmatprep.subr.mxu0 0.0
    %72 = vmatpush1.msra.mxu0 0.0
    %73 = vmatprep.subr.mxu0 0.0
    %74 = vmatpush1.msra.mxu0 0.0
    %75 = vmatprep.subr.mxu0 0.0
    %76 = vmatpush1.msra.mxu0 0.0
    %77 = vmatprep.subr.mxu0 0.0
    %78 = vmatpush1.msra.mxu0 0.0
    %79 = vmatprep.subr.mxu0 0.0
    %80 = vmatpush1.msra.mxu0 0.0
    %81 = vmatprep.subr.mxu0 0.0
    %82 = vmatpush1.msra.mxu0 0.0
    %83 = vmatprep.subr.mxu0 0.0
    %84 = vmatpush1.msra.mxu0 0.0
    %85 = vmatprep.subr.mxu0 0.0
    %86 = vmatpush1.msra.mxu0 0.0
    %87 = vmatprep.subr.mxu0 0.0
    %88 = vmatpush1.msra.mxu0 0.0
    %89 = vmatprep.subr.mxu0 %v48
    %90 = vmatpush1.msra.mxu0 %v47
    %91 = vmatprep.subr.mxu0 %v46
    %92 = vmatpush1.msra.mxu0 %v45
    %93 = vmatprep.subr.mxu0 %v44
    %94 = vmatpush1.msra.mxu0 %v43
    %95 = vmatprep.subr.mxu0 %v42
    %96 = vmatpush1.msra.mxu0 %v41
    %97 = vmatprep.subr.mxu0 0.0
    %98 = vmatpush2.msra.mxu0 0.0
    %99 = vmatprep.subr.mxu0 0.0
    %100 = vmatpush2.msra.mxu0 0.0
    %101 = vmatprep.subr.mxu0 0.0
    %102 = vmatpush2.msra.mxu0 0.0
    %103 = vmatprep.subr.mxu0 0.0
    %104 = vmatpush2.msra.mxu0 0.0
    %105 = vmatprep.subr.mxu0 0.0
    %106 = vmatpush2.msra.mxu0 0.0
    %107 = vmatprep.subr.mxu0 0.0
    %108 = vmatpush2.msra.mxu0 0.0
    %109 = vmatprep.subr.mxu0 0.0
    %110 = vmatpush2.msra.mxu0 0.0
    %111 = vmatprep.subr.mxu0 0.0
    %112 = vmatpush2.msra.mxu0 0.0
    %113 = vmatprep.subr.mxu0 0.0
    %114 = vmatpush2.msra.mxu0 0.0
    %115 = vmatprep.subr.mxu0 0.0
    %116 = vmatpush2.msra.mxu0 0.0
    %117 = vmatprep.subr.mxu0 0.0
    %118 = vmatpush2.msra.mxu0 0.0
    %119 = vmatprep.subr.mxu0 0.0
    %120 = vmatpush2.msra.mxu0 0.0
    %121 = vmatprep.subr.mxu0 0.0
    %122 = vmatpush2.msra.mxu0 0.0
    %123 = vmatprep.subr.mxu0 0.0
    %124 = vmatpush2.msra.mxu0 0.0
    %125 = vmatprep.subr.mxu0 0.0
    %126 = vmatpush2.msra.mxu0 0.0
    %127 = vmatprep.subr.mxu0 0.0
    %128 = vmatpush2.msra.mxu0 0.0
    %129 = vmatprep.mubr.f32.mxu0 0.0
    %130 = vmatmul.mubr.f32.gmra.mxu0 %v63
    %v131 = vpop.f32.mrf.mxu0
    %v132 = vadd.f32 %v54, %v131
    %v133 = vpop.f32.mrf.mxu0
    %v134 = vadd.f32 %v58, %v133
    %135 = vdwg.mxu0
    %136 = vst [vmem:[%s3] sm:$0xff] %v132
    %137 = vst [vmem:[%s3 + $0x8] sm:$0xff] %v134
    // Predicated region
    $region22: #{vae_linear_fused.1} parent=1 // pred_check
      _
    $region23: #{vae_linear_fused.1} parent=1 // pred_check_branch
      %139 = sbr.rel (0) target = $region25
    $region24: #{vae_linear_fused.1} parent=1 // pred_region
      _
    $region25: #{vae_linear_fused.1} parent=1 // pred_fallthru
      _
    // Predicated region
    $region26: #{vae_linear_fused.1} parent=1 // pred_check
      _
    $region27: #{vae_linear_fused.1} parent=1 // pred_check_branch
      %141 = sbr.rel (0) target = $region29
    $region28: #{vae_linear_fused.1} parent=1 // pred_region
      _
    $region29: #{vae_linear_fused.1} parent=1 // pred_fallthru
      _
    %142 = vsyncpa [#allocation3], 1
    %143 = vsyncpa [#allocation5], 1

</llo_original>
